<compile_context>
chip_gen: v6e
topology: v6e:2x2x1
jax: 0.10.0
libtpu: 0.0.40
codegen_flags: <defaults>
</compile_context>

<pallas_src>
import jax
import jax.numpy as jnp
from jax.experimental import pallas as pl
from jax.experimental.pallas import tpu as pltpu


def _round_up(x, m):
    return (x + m - 1) // m * m


def _cdiv(a, b):
    return -(-a // b)


def _patchnce_mlp_kernel(sid_ref, x_ref, w1_ref, b1_ref, w2_ref, b2_ref, o_ref):
    # sid_ref: SMEM per-tile sample-id table (used only by the index_maps).
    del sid_ref
    x = x_ref[...]                                               # (tm, c_pad) bf16
    h = jnp.dot(x, w1_ref[...], preferred_element_type=jnp.float32)
    h = jnp.maximum(h + b1_ref[...], 0.0)                        # bias + ReLU (f32)
    y = jnp.dot(h.astype(jnp.bfloat16), w2_ref[...],
                preferred_element_type=jnp.float32)
    y = y + b2_ref[...]
    # Normalize(power=2): x / (sqrt(sum(x^2, dim=1)) + 1e-7)  (eps OUTSIDE sqrt)
    norm = jnp.sqrt(jnp.sum(y * y, axis=-1, keepdims=True))
    inv = pl.reciprocal(norm + 1e-7, approx=True)                # EUP slot
    o_ref[...] = (y * inv).astype(o_ref.dtype)


def _patchnce_bucket(sid, x_cat, w1_stk, b1_stk, w2_stk, b2_stk, *, tm, nc):
    """One fused launch for a channel bucket.

    x_cat:  [total_rows, c_pad]  (bf16, rows = per-sample padded tiles, concatenated)
    sid:    [total_rows // tm]   int32 sample id per row tile (scalar-prefetched)
    w1_stk: [S, c_pad, nc] bf16; b1_stk/b2_stk: [S, 1, nc] f32; w2_stk: [S, nc, nc] bf16
    """
    total_rows, c_pad = x_cat.shape
    n_tiles = total_rows // tm
    return pl.pallas_call(
        _patchnce_mlp_kernel,
        out_shape=jax.ShapeDtypeStruct((total_rows, nc), jnp.float32),
        grid_spec=pltpu.PrefetchScalarGridSpec(
            num_scalar_prefetch=1,
            grid=(n_tiles,),
            in_specs=[
                # row tile ti of the concatenated activations
                pl.BlockSpec((tm, c_pad), lambda ti, sid_r: (ti, 0)),
                # per-sample weight slabs, selected by the prefetched sample id;
                # the block index only changes at sample boundaries -> weights
                # are DMA'd once per sample, not once per row tile.
                pl.BlockSpec((None, c_pad, nc), lambda ti, sid_r: (sid_r[ti], 0, 0)),  # W1
                pl.BlockSpec((None, 1, nc),     lambda ti, sid_r: (sid_r[ti], 0, 0)),  # b1
                pl.BlockSpec((None, nc, nc),    lambda ti, sid_r: (sid_r[ti], 0, 0)),  # W2
                pl.BlockSpec((None, 1, nc),     lambda ti, sid_r: (sid_r[ti], 0, 0)),  # b2
            ],
            out_specs=pl.BlockSpec((tm, nc), lambda ti, sid_r: (ti, 0)),
        ),
        compiler_params=pltpu.CompilerParams(
            dimension_semantics=("parallel",)),
    )(sid, x_cat, w1_stk, b1_stk, w2_stk, b2_stk)


def init_mlp_params(key, input_nc, nc):
    """Weights ~ N(0, 0.02) (as in the module); biases keep the PyTorch Linear
    default U(-1/sqrt(fan_in), 1/sqrt(fan_in)). Stored as [in, out], f32."""
    k1, k2, k3, k4 = jax.random.split(key, 4)
    w1 = 0.02 * jax.random.normal(k1, (input_nc, nc), jnp.float32)
    w2 = 0.02 * jax.random.normal(k2, (nc, nc), jnp.float32)
    bound1 = 1.0 / float(input_nc) ** 0.5
    bound2 = 1.0 / float(nc) ** 0.5
    b1 = jax.random.uniform(k3, (1, nc), jnp.float32, -bound1, bound1)
    b2 = jax.random.uniform(k4, (1, nc), jnp.float32, -bound2, bound2)
    return w1, b1, w2, b2


def patchnce_forward(samples, key, nc=256, tm_target=512):
    """Mirror of PatchNCE.forward: one fresh MLP per sample, apply, l2-normalize.

    Samples are bucketed by their 128-rounded channel count (so narrow samples
    never pay for wide ones), row-concatenated with per-sample padding only to
    a row-tile multiple, cast to bf16 during that single copy, and run as one
    fused pallas_call per bucket with a scalar-prefetched sample-id table.
    """
    assert len(samples) >= 1
    outs = [None] * len(samples)

    # Bucket by padded channel width.
    buckets = {}
    for idx, feat in enumerate(samples):
        c_pad = _round_up(int(feat.shape[1]), 128)
        buckets.setdefault(c_pad, []).append(idx)

    for c_pad, idxs in buckets.items():
        n_list = [int(samples[i].shape[0]) for i in idxs]
        n_max = max(n_list)
        # Big-but-balanced row tile: at most ~tm_target rows per tile, multiple
        # of 16 (bf16 sublane packing), padding waste bounded per sample.
        n_chunks = max(1, _cdiv(n_max, tm_target))
        tm = _round_up(_cdiv(n_max, n_chunks), 16)

        x_parts, sid_parts = [], []
        w1s, b1s, w2s, b2s = [], [], [], []
        row_off, total_rows = {}, 0
        for local_s, i in enumerate(idxs):
            feat = samples[i]
            n_i, c_i = int(feat.shape[0]), int(feat.shape[1])
            n_pad_i = _cdiv(n_i, tm) * tm
            w1, b1, w2, b2 = init_mlp_params(jax.random.fold_in(key, i), c_i, nc)
            # Single pad+cast copy of the activations (half-width, bf16).
            x_parts.append(jnp.pad(feat.astype(jnp.bfloat16),
                                   ((0, n_pad_i - n_i), (0, c_pad - c_i))))
            sid_parts.extend([local_s] * (n_pad_i // tm))
            # Zero rows added to W1 for the padded channels -> math stays exact.
            w1s.append(jnp.pad(w1.astype(jnp.bfloat16), ((0, c_pad - c_i), (0, 0))))
            b1s.append(b1)
            w2s.append(w2.astype(jnp.bfloat16))
            b2s.append(b2)
            row_off[i] = total_rows
            total_rows += n_pad_i

        x_cat = jnp.concatenate(x_parts, axis=0)
        sid = jnp.asarray(sid_parts, dtype=jnp.int32)
        out = _patchnce_bucket(sid, x_cat,
                               jnp.stack(w1s), jnp.stack(b1s),
                               jnp.stack(w2s), jnp.stack(b2s),
                               tm=tm, nc=nc)
        for i in idxs:
            n_i = int(samples[i].shape[0])
            outs[i] = out[row_off[i]:row_off[i] + n_i, :]
    return outs


def _reference(samples, key, nc=256):
    """Pure-JAX reference with the same bf16 MXU numerics as the kernel."""
    outs = []
    for mlp_id, feat in enumerate(samples):
        w1, b1, w2, b2 = init_mlp_params(
            jax.random.fold_in(key, mlp_id), int(feat.shape[1]), nc)
        h = jnp.dot(feat.astype(jnp.bfloat16), w1.astype(jnp.bfloat16),
                    preferred_element_type=jnp.float32)
        h = jnp.maximum(h + b1, 0.0)
        y = jnp.dot(h.astype(jnp.bfloat16), w2.astype(jnp.bfloat16),
                    preferred_element_type=jnp.float32)
        y = y + b2
        norm = jnp.sqrt(jnp.sum(y * y, axis=-1, keepdims=True))
        outs.append(y / (norm + 1e-7))
    return outs


if __name__ == "__main__":
    key = jax.random.PRNGKey(0)
    k_data, k_params = jax.random.split(key)

    # Two "sampled patch feature" tensors, as the module's `samples` list:
    # [num_patches, input_nc] each, intentionally with different shapes.
    samples = [
        jax.random.normal(jax.random.fold_in(k_data, 0), (128, 64), jnp.float32),
        jax.random.normal(jax.random.fold_in(k_data, 1), (96, 96), jnp.float32),
    ]

    outs = patchnce_forward(samples, k_params, nc=256)
    outs = [jax.block_until_ready(o) for o in outs]

    refs = _reference(samples, k_params, nc=256)
    for o, r in zip(outs, refs):
        assert o.shape == r.shape
        # approx=True EUP reciprocal in the final normalize -> slightly relaxed
        # tolerance (outputs are l2-normalized, components in [-1, 1]).
        assert jnp.allclose(o, r, atol=5e-3, rtol=5e-3), \
            float(jnp.max(jnp.abs(o - r)))

    print("KERNEL_OK")
</pallas_src>

<mosaic_0001>
module attributes {stable_mosaic.version = 11 : i64} {
  func.func @_patchnce_mlp_kernel(%arg0: i32, %arg1: memref<2xi32, #tpu.memory_space<smem>>, %arg2: memref<128x128xbf16, #tpu.memory_space<vmem>>, %arg3: memref<1x128x256xbf16, #tpu.memory_space<vmem>>, %arg4: memref<1x1x256xf32, #tpu.memory_space<vmem>>, %arg5: memref<1x256x256xbf16, #tpu.memory_space<vmem>>, %arg6: memref<1x1x256xf32, #tpu.memory_space<vmem>>, %arg7: memref<128x256xf32, #tpu.memory_space<vmem>>) attributes {dimension_semantics = [#tpu.dimension_semantics<parallel>], iteration_bounds = array<i64: 2>, scalar_prefetch = 1 : i64, scratch_operands = 0 : i64, tpu.core_type = #tpu.core_type<tc>, window_params = [{transform_indices = @transform_0, window_bounds = array<i64: 128, 128>}, {transform_indices = @transform_1, window_bounds = array<i64: 1, 128, 256>}, {transform_indices = @transform_2, window_bounds = array<i64: 1, 1, 256>}, {transform_indices = @transform_3, window_bounds = array<i64: 1, 256, 256>}, {transform_indices = @transform_4, window_bounds = array<i64: 1, 1, 256>}, {transform_indices = @transform_5, window_bounds = array<i64: 128, 256>}]} {
    %c0 = arith.constant 0 : index
    %c0_0 = arith.constant 0 : index
    %0 = vector.load %arg2[%c0, %c0_0] : memref<128x128xbf16, #tpu.memory_space<vmem>>, vector<128x128xbf16>
    %c0_1 = arith.constant 0 : index
    %c0_2 = arith.constant 0 : index
    %c0_3 = arith.constant 0 : index
    %1 = vector.load %arg3[%c0_1, %c0_2, %c0_3] : memref<1x128x256xbf16, #tpu.memory_space<vmem>>, vector<1x128x256xbf16>
    %2 = vector.shape_cast %1 : vector<1x128x256xbf16> to vector<128x256xbf16>
    %cst = arith.constant dense<0.000000e+00> : vector<128x256xf32>
    %3 = tpu.matmul %0, %2, %cst {dimension_numbers = #tpu.dot_dimension_numbers<[1], [0], [0], [1], [0, 0, 1, 1], [], []>} : vector<128x128xbf16>, vector<128x256xbf16>, vector<128x256xf32> -> vector<128x256xf32>
    %c0_4 = arith.constant 0 : index
    %c0_5 = arith.constant 0 : index
    %c0_6 = arith.constant 0 : index
    %4 = vector.load %arg4[%c0_4, %c0_5, %c0_6] : memref<1x1x256xf32, #tpu.memory_space<vmem>>, vector<1x1x256xf32>
    %5 = vector.shape_cast %4 : vector<1x1x256xf32> to vector<1x256xf32>
    %6 = vector.broadcast %5 : vector<1x256xf32> to vector<128x256xf32>
    %7 = arith.addf %3, %6 : vector<128x256xf32>
    %cst_7 = arith.constant 0.000000e+00 : f32
    %8 = vector.broadcast %cst_7 : f32 to vector<128x256xf32>
    %9 = arith.maximumf %7, %8 : vector<128x256xf32>
    %10 = arith.truncf %9 : vector<128x256xf32> to vector<128x256xbf16>
    %c0_8 = arith.constant 0 : index
    %c0_9 = arith.constant 0 : index
    %c0_10 = arith.constant 0 : index
    %11 = vector.load %arg5[%c0_8, %c0_9, %c0_10] : memref<1x256x256xbf16, #tpu.memory_space<vmem>>, vector<1x256x256xbf16>
    %12 = vector.shape_cast %11 : vector<1x256x256xbf16> to vector<256x256xbf16>
    %cst_11 = arith.constant dense<0.000000e+00> : vector<128x256xf32>
    %13 = tpu.matmul %10, %12, %cst_11 {dimension_numbers = #tpu.dot_dimension_numbers<[1], [0], [0], [1], [0, 0, 1, 1], [], []>} : vector<128x256xbf16>, vector<256x256xbf16>, vector<128x256xf32> -> vector<128x256xf32>
    %c0_12 = arith.constant 0 : index
    %c0_13 = arith.constant 0 : index
    %c0_14 = arith.constant 0 : index
    %14 = vector.load %arg6[%c0_12, %c0_13, %c0_14] : memref<1x1x256xf32, #tpu.memory_space<vmem>>, vector<1x1x256xf32>
    %15 = vector.shape_cast %14 : vector<1x1x256xf32> to vector<1x256xf32>
    %16 = vector.broadcast %15 : vector<1x256xf32> to vector<128x256xf32>
    %17 = arith.addf %13, %16 : vector<128x256xf32>
    %18 = arith.mulf %17, %17 : vector<128x256xf32>
    %cst_15 = arith.constant dense<0.000000e+00> : vector<128xf32>
    %19 = vector.multi_reduction <add>, %18, %cst_15 [1] : vector<128x256xf32> to vector<128xf32>
    %20 = vector.shape_cast %19 : vector<128xf32> to vector<128x1xf32>
    %21 = math.sqrt %20 : vector<128x1xf32>
    %cst_16 = arith.constant 1.000000e-07 : f32
    %22 = vector.broadcast %cst_16 : f32 to vector<128x1xf32>
    %23 = arith.addf %21, %22 : vector<128x1xf32>
    %24 = tpu.reciprocal %23 {approx = true} : vector<128x1xf32> -> vector<128x1xf32>
    %25 = vector.broadcast %24 : vector<128x1xf32> to vector<128x256xf32>
    %26 = arith.mulf %17, %25 : vector<128x256xf32>
    %c0_17 = arith.constant 0 : index
    %c0_18 = arith.constant 0 : index
    %27 = vector.load %arg7[%c0_17, %c0_18] : memref<128x256xf32, #tpu.memory_space<vmem>>, vector<128x256xf32>
    tpu.vector_store %arg7[%c0_17, %c0_18], %26 {strides = array<i32>} : memref<128x256xf32, #tpu.memory_space<vmem>>, vector<128x256xf32>,
    return
  }
  func.func @transform_0(%arg0: i32, %arg1: memref<2xi32, #tpu.memory_space<smem>>) -> (i32, i32) {
    %c0_i32 = arith.constant 0 : i32
    %c0_i32_0 = arith.constant 0 : i32
    return %arg0, %c0_i32 : i32, i32
  }
  func.func @transform_1(%arg0: i32, %arg1: memref<2xi32, #tpu.memory_space<smem>>) -> (i32, i32, i32) {
    %0 = arith.index_cast %arg0 : i32 to index
    %1 = memref.load %arg1[%0] : memref<2xi32, #tpu.memory_space<smem>>
    %c0_i32 = arith.constant 0 : i32
    %c0_i32_0 = arith.constant 0 : i32
    %c0_i32_1 = arith.constant 0 : i32
    return %1, %c0_i32, %c0_i32_0 : i32, i32, i32
  }
  func.func @transform_2(%arg0: i32, %arg1: memref<2xi32, #tpu.memory_space<smem>>) -> (i32, i32, i32) {
    %0 = arith.index_cast %arg0 : i32 to index
    %1 = memref.load %arg1[%0] : memref<2xi32, #tpu.memory_space<smem>>
    %c0_i32 = arith.constant 0 : i32
    %c0_i32_0 = arith.constant 0 : i32
    %c0_i32_1 = arith.constant 0 : i32
    return %1, %c0_i32, %c0_i32_0 : i32, i32, i32
  }
  func.func @transform_3(%arg0: i32, %arg1: memref<2xi32, #tpu.memory_space<smem>>) -> (i32, i32, i32) {
    %0 = arith.index_cast %arg0 : i32 to index
    %1 = memref.load %arg1[%0] : memref<2xi32, #tpu.memory_space<smem>>
    %c0_i32 = arith.constant 0 : i32
    %c0_i32_0 = arith.constant 0 : i32
    %c0_i32_1 = arith.constant 0 : i32
    return %1, %c0_i32, %c0_i32_0 : i32, i32, i32
  }
  func.func @transform_4(%arg0: i32, %arg1: memref<2xi32, #tpu.memory_space<smem>>) -> (i32, i32, i32) {
    %0 = arith.index_cast %arg0 : i32 to index
    %1 = memref.load %arg1[%0] : memref<2xi32, #tpu.memory_space<smem>>
    %c0_i32 = arith.constant 0 : i32
    %c0_i32_0 = arith.constant 0 : i32
    %c0_i32_1 = arith.constant 0 : i32
    return %1, %c0_i32, %c0_i32_0 : i32, i32, i32
  }
  func.func @transform_5(%arg0: i32, %arg1: memref<2xi32, #tpu.memory_space<smem>>) -> (i32, i32) {
    %c0_i32 = arith.constant 0 : i32
    %c0_i32_0 = arith.constant 0 : i32
    return %arg0, %c0_i32 : i32, i32
  }
}

</mosaic_0001>

<llo_original>
// kernel: tpu_custom_call.1
$region0: #{tpu_custom_call.1}
  #allocation0 [shape = 'u32[]', space=smem, size = 0x4, offset = 0x4, fixed_abs, tag = 'smem constant byte address 0x4 - core index']
  #allocation1 [shape = 'u32[144,128]{1,0:T(1,128)}', space=vmem, size = 0x12000, scoped, tag = 'internal scratch']
  #allocation2 [shape = 's32[1]{0}', space=sflag, size = 0x4, scoped, tag = 'scoped memory for tpu_custom_call.1']
  #allocation3 [shape = 'u8[512]{0}', space=smem, size = 0x200, scoped, tag = 'prefetched SMEM operand 0']
  %s0 = inlined_call_operand.hbm [shape: s32[2], index: 0, kind: input, shape index: {}]
  %s1 = inlined_call_operand.hbm [shape: bf16[256,128], index: 1, kind: input, shape index: {}]
  %s2 = inlined_call_operand.hbm [shape: bf16[2,128,256], index: 2, kind: input, shape index: {}]
  %s3 = inlined_call_operand.vmem [shape: f32[2,1,256], index: 3, kind: input, shape index: {}]
  %s4 = inlined_call_operand.hbm [shape: bf16[2,256,256], index: 4, kind: input, shape index: {}]
  %s5 = inlined_call_operand.vmem [shape: f32[2,1,256], index: 5, kind: input, shape index: {}]
  %s6 = inlined_call_operand.hbm [shape: f32[256,256], index: 6, kind: output, shape index: {}]
  %s7 = sld [smem:[#allocation0]]
  $region65: #{tpu_custom_call.1} parent=0
    _
  %s9 = ssub.s32 1, %s7
  %s10 = scalar_select 0, %s9, %s7
  %12 = dma.hbm_to_smem %s0, 16, [#allocation3], [#allocation2]
  %13 = dma.done [#allocation2], 16
  %14 = sfence
  $region1: #{tpu_custom_call.1} parent=0
    #allocation4 [shape = 'u8[65536]{0}', space=vmem, size = 0x10000, scoped, tag = 'input window, operand 1']
    #allocation5 [shape = 's32[2]{0}', space=sflag, size = 0x8, scoped, tag = 'scoped memory for tpu_custom_call.1']
    #allocation6 [shape = 's32[2]{0}', space=sflag, size = 0x8, scoped, tag = 'scoped memory for tpu_custom_call.1']
    #allocation7 [shape = 'u8[131072]{0}', space=vmem, size = 0x20000, scoped, tag = 'input window, operand 2']
    #allocation8 [shape = 's32[2]{0}', space=sflag, size = 0x8, scoped, tag = 'scoped memory for tpu_custom_call.1']
    #allocation9 [shape = 'u8[262144]{0}', space=vmem, size = 0x40000, scoped, tag = 'input window, operand 4']
    #allocation10 [shape = 'u8[262144]{0}', space=vmem, size = 0x40000, scoped, tag = 'output window, operand 0']
    %15 = vsyncpa [#allocation5], 0
    %s16 = scalar_lea.sflag [#allocation5], 1
    %17 = vsyncpa %s16, 0
    %18 = vsyncpa [#allocation8], 0
    %s19 = scalar_lea.sflag [#allocation8], 1
    %20 = vsyncpa %s19, 0
    %21 = vsyncpa [#allocation6], 0
    %s22 = scalar_lea.sflag [#allocation6], 1
    %23 = vsyncpa %s22, 0
    loop: start=0, step=1, limit=4
    $region2: #{tpu_custom_call.1} parent=1 // loop_pre_header
      _
    $region3: #{tpu_custom_call.1} parent=1 // loop_header
      %s25 = sphi 0, %s29
      %p26 = scmp.ge.s32.totalorder %s25, 4
      %s35 = sphi 0, %s37
      %s38 = sphi 0, %s35
      %s39 = sphi 0, %s38
      %s55 = sphi 0, %s39
      %s63 = sphi 0, %s65
      %s66 = sphi 0, %s63
      %s67 = sphi 0, %s66
      %s83 = sphi 0, %s67
      %s91 = sphi 0, %s93
      %s94 = sphi 0, %s91
      %s95 = sphi 0, %s94
      %s111 = sphi 0, %s95
      %s119 = sphi 0, %s121
      %s122 = sphi 0, %s119
      %s123 = sphi 0, %s122
      %s139 = sphi 0, %s123
      %s147 = sphi 0, %s149
      %s150 = sphi 0, %s147
      %s151 = sphi 0, %s150
      %s167 = sphi 0, %s151
      %s173 = sphi 0, %s175
      %s176 = sphi 0, %s173
      %s177 = sphi 0, %s176
      %s193 = sphi 0, %s177
    $region4: #{tpu_custom_call.1} parent=1 // loop_header_branch
      %28 = sbr.rel (%p26) target = $region8
    $region5: #{tpu_custom_call.1} parent=1 // loop_body
      %s30 = ssub.s32 %s25, 1
      %s31 = ssub.s32 %s25, 2
      %s32 = sadd.s32 %s25, 1
      %s33 = ssub.s32 %s25, %s32
      %p34 = scmp.eq.s32.totalorder %s33, 0
      %s36 = sadd.s32 %s35, 1
      %s37 = scalar_select %p34, %s35, %s36
      %p40 = pneg %p34
      %p41 = scmp.eq.s32.totalorder %s25, 1
      %p42 = por %p40, %p41
      %p43 = scmp.ne.s32.totalorder %s35, %s38
      %p44 = scmp.eq.s32.totalorder %s25, 0
      %p45 = por %p43, %p44
      %p46 = scmp.ne.s32.totalorder %s35, %s38
      %p47 = scmp.eq.s32.totalorder %s30, 1
      %p48 = por %p46, %p47
      %p49 = scmp.ne.s32.totalorder %s38, %s39
      %p50 = scmp.eq.s32.totalorder %s30, 0
      %p51 = por %p49, %p50
      %p52 = scmp.ne.s32.totalorder %s38, %s39
      %p53 = scmp.eq.s32.totalorder %s31, 1
      %p54 = por %p52, %p53
      %p56 = scmp.ne.s32.totalorder %s39, %s55
      %p57 = scmp.eq.s32.totalorder %s31, 0
      %p58 = por %p56, %p57
      %s59 = sld [smem:[#allocation3 + %s25]]
      %s60 = sld [smem:[#allocation3 + %s32]]
      %s61 = ssub.s32 %s59, %s60
      %p62 = scmp.eq.s32.totalorder %s61, 0
      %s64 = sadd.s32 %s63, 1
      %s65 = scalar_select %p62, %s63, %s64
      %p68 = pneg %p62
      %p69 = scmp.eq.s32.totalorder %s25, 1
      %p70 = por %p68, %p69
      %p71 = scmp.ne.s32.totalorder %s63, %s66
      %p72 = scmp.eq.s32.totalorder %s25, 0
      %p73 = por %p71, %p72
      %p74 = scmp.ne.s32.totalorder %s63, %s66
      %p75 = scmp.eq.s32.totalorder %s30, 1
      %p76 = por %p74, %p75
      %p77 = scmp.ne.s32.totalorder %s66, %s67
      %p78 = scmp.eq.s32.totalorder %s30, 0
      %p79 = por %p77, %p78
      %p80 = scmp.ne.s32.totalorder %s66, %s67
      %p81 = scmp.eq.s32.totalorder %s31, 1
      %p82 = por %p80, %p81
      %p84 = scmp.ne.s32.totalorder %s67, %s83
      %p85 = scmp.eq.s32.totalorder %s31, 0
      %p86 = por %p84, %p85
      %s87 = sld [smem:[#allocation3 + %s25]]
      %s88 = sld [smem:[#allocation3 + %s32]]
      %s89 = ssub.s32 %s87, %s88
      %p90 = scmp.eq.s32.totalorder %s89, 0
      %s92 = sadd.s32 %s91, 1
      %s93 = scalar_select %p90, %s91, %s92
      %p96 = pneg %p90
      %p97 = scmp.eq.s32.totalorder %s25, 1
      %p98 = por %p96, %p97
      %p99 = scmp.ne.s32.totalorder %s91, %s94
      %p100 = scmp.eq.s32.totalorder %s25, 0
      %p101 = por %p99, %p100
      %p102 = scmp.ne.s32.totalorder %s91, %s94
      %p103 = scmp.eq.s32.totalorder %s30, 1
      %p104 = por %p102, %p103
      %p105 = scmp.ne.s32.totalorder %s94, %s95
      %p106 = scmp.eq.s32.totalorder %s30, 0
      %p107 = por %p105, %p106
      %p108 = scmp.ne.s32.totalorder %s94, %s95
      %p109 = scmp.eq.s32.totalorder %s31, 1
      %p110 = por %p108, %p109
      %p112 = scmp.ne.s32.totalorder %s95, %s111
      %p113 = scmp.eq.s32.totalorder %s31, 0
      %p114 = por %p112, %p113
      %s115 = sld [smem:[#allocation3 + %s25]]
      %s116 = sld [smem:[#allocation3 + %s32]]
      %s117 = ssub.s32 %s115, %s116
      %p118 = scmp.eq.s32.totalorder %s117, 0
      %s120 = sadd.s32 %s119, 1
      %s121 = scalar_select %p118, %s119, %s120
      %p124 = pneg %p118
      %p125 = scmp.eq.s32.totalorder %s25, 1
      %p126 = por %p124, %p125
      %p127 = scmp.ne.s32.totalorder %s119, %s122
      %p128 = scmp.eq.s32.totalorder %s25, 0
      %p129 = por %p127, %p128
      %p130 = scmp.ne.s32.totalorder %s119, %s122
      %p131 = scmp.eq.s32.totalorder %s30, 1
      %p132 = por %p130, %p131
      %p133 = scmp.ne.s32.totalorder %s122, %s123
      %p134 = scmp.eq.s32.totalorder %s30, 0
      %p135 = por %p133, %p134
      %p136 = scmp.ne.s32.totalorder %s122, %s123
      %p137 = scmp.eq.s32.totalorder %s31, 1
      %p138 = por %p136, %p137
      %p140 = scmp.ne.s32.totalorder %s123, %s139
      %p141 = scmp.eq.s32.totalorder %s31, 0
      %p142 = por %p140, %p141
      %s143 = sld [smem:[#allocation3 + %s25]]
      %s144 = sld [smem:[#allocation3 + %s32]]
      %s145 = ssub.s32 %s143, %s144
      %p146 = scmp.eq.s32.totalorder %s145, 0
      %s148 = sadd.s32 %s147, 1
      %s149 = scalar_select %p146, %s147, %s148
      %p152 = pneg %p146
      %p153 = scmp.eq.s32.totalorder %s25, 1
      %p154 = por %p152, %p153
      %p155 = scmp.ne.s32.totalorder %s147, %s150
      %p156 = scmp.eq.s32.totalorder %s25, 0
      %p157 = por %p155, %p156
      %p158 = scmp.ne.s32.totalorder %s147, %s150
      %p159 = scmp.eq.s32.totalorder %s30, 1
      %p160 = por %p158, %p159
      %p161 = scmp.ne.s32.totalorder %s150, %s151
      %p162 = scmp.eq.s32.totalorder %s30, 0
      %p163 = por %p161, %p162
      %p164 = scmp.ne.s32.totalorder %s150, %s151
      %p165 = scmp.eq.s32.totalorder %s31, 1
      %p166 = por %p164, %p165
      %p168 = scmp.ne.s32.totalorder %s151, %s167
      %p169 = scmp.eq.s32.totalorder %s31, 0
      %p170 = por %p168, %p169
      %s171 = ssub.s32 %s25, %s32
      %p172 = scmp.eq.s32.totalorder %s171, 0
      %s174 = sadd.s32 %s173, 1
      %s175 = scalar_select %p172, %s173, %s174
      %p178 = pneg %p172
      %p179 = scmp.eq.s32.totalorder %s25, 1
      %p180 = por %p178, %p179
      %p181 = scmp.ne.s32.totalorder %s173, %s176
      %p182 = scmp.eq.s32.totalorder %s25, 0
      %p183 = por %p181, %p182
      %p184 = scmp.ne.s32.totalorder %s173, %s176
      %p185 = scmp.eq.s32.totalorder %s30, 1
      %p186 = por %p184, %p185
      %p187 = scmp.ne.s32.totalorder %s176, %s177
      %p188 = scmp.eq.s32.totalorder %s30, 0
      %p189 = por %p187, %p188
      %p190 = scmp.ne.s32.totalorder %s176, %s177
      %p191 = scmp.eq.s32.totalorder %s31, 1
      %p192 = por %p190, %p191
      %p194 = scmp.ne.s32.totalorder %s177, %s193
      %p195 = scmp.eq.s32.totalorder %s31, 0
      %p196 = por %p194, %p195
      %p197 = scmp.le.s32.totalorder 1, %s25
      %p198 = scmp.lt.s32.totalorder %s25, 3
      %p199 = pnand %p197, %p198
      %p200 = pneg %p199
      // Predicated region
      $region9: #{tpu_custom_call.1} parent=5 // pred_check
        _
      $region10: #{tpu_custom_call.1} parent=5 // pred_check_branch
        %202 = sbr.rel (%p199) target = $region12
      $region11: #{tpu_custom_call.1} parent=5 // pred_region
        %s203 = ssub.s32 %s25, 1
      $region12: #{tpu_custom_call.1} parent=5 // pred_fallthru
        _
      %p204 = scmp.lt.s32.totalorder %s25, 2
      // Predicated region
      $region13: #{tpu_custom_call.1} parent=5 // pred_check
        %p205 = pneg %p204
      $region14: #{tpu_custom_call.1} parent=5 // pred_check_branch
        %207 = sbr.rel (%p205) target = $region16
      $region15: #{tpu_custom_call.1} parent=5 // pred_region
        // Predicated region
        $region17: #{tpu_custom_call.1} parent=15 // pred_check
          %p208 = pneg %p45
        $region18: #{tpu_custom_call.1} parent=15 // pred_check_branch
          %210 = sbr.rel (%p208) target = $region20
        $region19: #{tpu_custom_call.1} parent=15 // pred_region
          %s211 = sand.u32 %s35, 1
          %s212 = scalar_lea.sflag [#allocation5], %s211
          %s213 = sand.u32 %s35, 1
          %s214 = smul.addr %s213, 64
          %s215 = scalar_lea.vmem [#allocation4], %s214
          %s216 = smul.u32 16, %s25
          %s218 = ssub.s32 1024, 1024
          %219 = vsyncadd %s212, %s218
          %s220 = smul.addr %s216, 64
          %s221 = scalar_lea.hbm %s1, %s220
          %s222 = sshll.u32 %s215, 4
          %s223 = int_to_ptr.vmem [resolvable:$true] %s222
          %228 = dma.hbm_to_vmem [thread:$0]  %s221, 1024, %s223, %s212, 64, 64, 4
        $region20: #{tpu_custom_call.1} parent=15 // pred_fallthru
          _
        // Predicated region
        $region21: #{tpu_custom_call.1} parent=15 // pred_check
          %p229 = pneg %p73
        $region22: #{tpu_custom_call.1} parent=15 // pred_check_branch
          %231 = sbr.rel (%p229) target = $region24
        $region23: #{tpu_custom_call.1} parent=15 // pred_region
          %s232 = sand.u32 %s25, 1
          %s233 = scalar_lea.sflag [#allocation8], %s232
          %s234 = sand.u32 %s63, 1
          %s235 = smul.addr %s234, 128
          %s236 = scalar_lea.vmem [#allocation7], %s235
          %s237 = sld [smem:[#allocation3 + %s25]]
          %s239 = ssub.s32 2048, 2048
          %240 = vsyncadd %s233, %s239
          %s241 = smul.addr %s237, 32
          %s242 = smul.addr %s241, 64
          %s243 = scalar_lea.hbm %s2, %s242
          %s244 = sshll.u32 %s236, 4
          %s245 = int_to_ptr.vmem [resolvable:$true] %s244
          %250 = dma.hbm_to_vmem [thread:$0]  %s243, 2048, %s245, %s233, 128, 128, 8
        $region24: #{tpu_custom_call.1} parent=15 // pred_fallthru
          _
        // Predicated region
        $region25: #{tpu_custom_call.1} parent=15 // pred_check
          %p251 = pneg %p101
        $region26: #{tpu_custom_call.1} parent=15 // pred_check_branch
          %253 = sbr.rel (%p251) target = $region28
        $region27: #{tpu_custom_call.1} parent=15 // pred_region
          %s254 = sld [smem:[#allocation3 + %s25]]
          %p255 = scmp.lt.s32.totalorder %s254, 1
          %s256 = scalar_select %p255, %s254, 1
          %s257 = smul.addr %s256, 2
          %s258 = scalar_lea.vmem %s3, %s257
          %s259 = sld [smem:[#allocation3 + %s25]]
        $region28: #{tpu_custom_call.1} parent=15 // pred_fallthru
          _
        // Predicated region
        $region29: #{tpu_custom_call.1} parent=15 // pred_check
          %p260 = pneg %p129
        $region30: #{tpu_custom_call.1} parent=15 // pred_check_branch
          %262 = sbr.rel (%p260) target = $region32
        $region31: #{tpu_custom_call.1} parent=15 // pred_region
          %s263 = sand.u32 %s25, 1
          %s264 = scalar_lea.sflag [#allocation8], %s263
          %s265 = sand.u32 %s119, 1
          %s266 = smul.addr %s265, 256
          %s267 = scalar_lea.vmem [#allocation9], %s266
          %s268 = sld [smem:[#allocation3 + %s25]]
          %s270 = ssub.s32 4096, 4096
          %271 = vsyncadd %s264, %s270
          %s272 = smul.addr %s268, 64
          %s273 = smul.addr %s272, 64
          %s274 = scalar_lea.hbm %s4, %s273
          %s275 = sshll.u32 %s267, 4
          %s276 = int_to_ptr.vmem [resolvable:$true] %s275
          %281 = dma.hbm_to_vmem [thread:$0]  %s274, 4096, %s276, %s264, 128, 128, 8
        $region32: #{tpu_custom_call.1} parent=15 // pred_fallthru
          _
        // Predicated region
        $region33: #{tpu_custom_call.1} parent=15 // pred_check
          %p282 = pneg %p157
        $region34: #{tpu_custom_call.1} parent=15 // pred_check_branch
          %284 = sbr.rel (%p282) target = $region36
        $region35: #{tpu_custom_call.1} parent=15 // pred_region
          %s285 = sld [smem:[#allocation3 + %s25]]
          %p286 = scmp.lt.s32.totalorder %s285, 1
          %s287 = scalar_select %p286, %s285, 1
          %s288 = smul.addr %s287, 2
          %s289 = scalar_lea.vmem %s5, %s288
          %s290 = sld [smem:[#allocation3 + %s25]]
        $region36: #{tpu_custom_call.1} parent=15 // pred_fallthru
          _
      $region16: #{tpu_custom_call.1} parent=5 // pred_fallthru
        _
      %p291 = scmp.le.s32.totalorder 1, %s25
      %p292 = scmp.lt.s32.totalorder %s25, 3
      %p293 = pnand %p291, %p292
      %p294 = pneg %p293
      // Predicated region
      $region37: #{tpu_custom_call.1} parent=5 // pred_check
        _
      $region38: #{tpu_custom_call.1} parent=5 // pred_check_branch
        %296 = sbr.rel (%p293) target = $region40
      $region39: #{tpu_custom_call.1} parent=5 // pred_region
        %s297 = ssub.s32 %s25, 1
        %s298 = sand.u32 %s38, 1
        %s299 = scalar_lea.sflag [#allocation5], %s298
        %s300 = sand.u32 %s38, 1
        %s301 = smul.addr %s300, 64
        %s302 = scalar_lea.vmem [#allocation4], %s301
        // Predicated region
        $region41: #{tpu_custom_call.1} parent=39 // pred_check
          %p303 = pneg %p51
        $region42: #{tpu_custom_call.1} parent=39 // pred_check_branch
          %305 = sbr.rel (%p303) target = $region44
        $region43: #{tpu_custom_call.1} parent=39 // pred_region
          %306 = dma.done %s299, 1024
        $region44: #{tpu_custom_call.1} parent=39 // pred_fallthru
          _
        %s307 = sand.u32 %s30, 1
        %s308 = scalar_lea.sflag [#allocation8], %s307
        %s309 = sand.u32 %s66, 1
        %s310 = smul.addr %s309, 128
        %s311 = scalar_lea.vmem [#allocation7], %s310
        // Predicated region
        $region45: #{tpu_custom_call.1} parent=39 // pred_check
          %p312 = pneg %p79
        $region46: #{tpu_custom_call.1} parent=39 // pred_check_branch
          %314 = sbr.rel (%p312) target = $region48
        $region47: #{tpu_custom_call.1} parent=39 // pred_region
          %315 = dma.done %s308, 2048
        $region48: #{tpu_custom_call.1} parent=39 // pred_fallthru
          _
        %s316 = sand.u32 %s30, 1
        %s317 = scalar_lea.sflag [#allocation8], %s316
        %s318 = sand.u32 %s122, 1
        %s319 = smul.addr %s318, 256
        %s320 = scalar_lea.vmem [#allocation9], %s319
        // Predicated region
        $region49: #{tpu_custom_call.1} parent=39 // pred_check
          %p321 = pneg %p135
        $region50: #{tpu_custom_call.1} parent=39 // pred_check_branch
          %323 = sbr.rel (%p321) target = $region52
        $region51: #{tpu_custom_call.1} parent=39 // pred_region
          %324 = dma.done %s317, 4096
        $region52: #{tpu_custom_call.1} parent=39 // pred_fallthru
          _
        %s325 = sand.u32 %s38, 1
        %s326 = scalar_lea.sflag [#allocation5], %s325
        %s327 = sand.u32 %s38, 1
        %s328 = smul.addr %s327, 64
        %s329 = scalar_lea.vmem [#allocation4], %s328
        %p330 = pneg %p51
        %p331 = pneg %p48
        %s332 = sand.u32 %s30, 1
        %s333 = scalar_lea.sflag [#allocation8], %s332
        %s334 = sand.u32 %s66, 1
        %s335 = smul.addr %s334, 128
        %s336 = scalar_lea.vmem [#allocation7], %s335
        %p337 = pneg %p79
        %p338 = pneg %p76
        %s339 = sld [smem:[#allocation3 + %s30]]
        %p340 = scmp.lt.s32.totalorder %s339, 1
        %s341 = scalar_select %p340, %s339, 1
        %s342 = smul.addr %s341, 2
        %s343 = scalar_lea.vmem %s3, %s342
        %p344 = pneg %p107
        %p345 = pneg %p104
        %s346 = sand.u32 %s30, 1
        %s347 = scalar_lea.sflag [#allocation8], %s346
        %s348 = sand.u32 %s122, 1
        %s349 = smul.addr %s348, 256
        %s350 = scalar_lea.vmem [#allocation9], %s349
        %p351 = pneg %p135
        %p352 = pneg %p132
        %s353 = sld [smem:[#allocation3 + %s30]]
        %p354 = scmp.lt.s32.totalorder %s353, 1
        %s355 = scalar_select %p354, %s353, 1
        %s356 = smul.addr %s355, 2
        %s357 = scalar_lea.vmem %s5, %s356
        %p358 = pneg %p163
        %p359 = pneg %p160
        %p360 = pneg %p189
        %p361 = pneg %p186
        %s362 = sand.u32 %s176, 1
        %s363 = scalar_lea.sflag [#allocation6], %s362
        %s364 = sand.u32 %s176, 1
        %s365 = smul.addr %s364, 256
        %s366 = scalar_lea.vmem [#allocation10], %s365
        %s367 = smul.u32 16, %s30
        %s368 = sld [smem:[#allocation3 + %s30]]
        %s369 = sld [smem:[#allocation3 + %s30]]
        %p370 = scmp.lt.s32.totalorder %s369, 1
        %s371 = scalar_select %p370, %s369, 1
        %s372 = smul.addr %s371, 2
        %s373 = scalar_lea.vmem %s3, %s372
        %s374 = sld [smem:[#allocation3 + %s30]]
        %s375 = sld [smem:[#allocation3 + %s30]]
        %s376 = sld [smem:[#allocation3 + %s30]]
        %p377 = scmp.lt.s32.totalorder %s376, 1
        %s378 = scalar_select %p377, %s376, 1
        %s379 = smul.addr %s378, 2
        %s380 = scalar_lea.vmem %s5, %s379
        %s381 = sld [smem:[#allocation3 + %s30]]
        %s382 = smul.u32 16, %s30
        %v384 = vld [vmem:[%s302] sm:$0xf]
        %v385 = vld [vmem:[%s302 + $0x4] sm:$0xf]
        %v386 = vld [vmem:[%s302 + $0x8] sm:$0xf]
        %v387 = vld [vmem:[%s302 + $0xc] sm:$0xf]
        %v388 = vld [vmem:[%s302 + $0x10] sm:$0xf]
        %v389 = vld [vmem:[%s302 + $0x14] sm:$0xf]
        %v390 = vld [vmem:[%s302 + $0x18] sm:$0xf]
        %v391 = vld [vmem:[%s302 + $0x1c] sm:$0xf]
        %v392 = vld [vmem:[%s302 + $0x20] sm:$0xf]
        %v393 = vld [vmem:[%s302 + $0x24] sm:$0xf]
        %v394 = vld [vmem:[%s302 + $0x28] sm:$0xf]
        %v395 = vld [vmem:[%s302 + $0x2c] sm:$0xf]
        %v396 = vld [vmem:[%s302 + $0x30] sm:$0xf]
        %v397 = vld [vmem:[%s302 + $0x34] sm:$0xf]
        %v398 = vld [vmem:[%s302 + $0x38] sm:$0xf]
        %v399 = vld [vmem:[%s302 + $0x3c] sm:$0xf]
        %v400 = vld [vmem:[%s311] sm:$0xff]
        %v401 = vld [vmem:[%s311 + $0x8] sm:$0xff]
        %v402 = vld [vmem:[%s311 + $0x10] sm:$0xff]
        %v403 = vld [vmem:[%s311 + $0x18] sm:$0xff]
        %v404 = vld [vmem:[%s311 + $0x20] sm:$0xff]
        %v405 = vld [vmem:[%s311 + $0x28] sm:$0xff]
        %v406 = vld [vmem:[%s311 + $0x30] sm:$0xff]
        %v407 = vld [vmem:[%s311 + $0x38] sm:$0xff]
        %v408 = vld [vmem:[%s311 + $0x40] sm:$0xff]
        %v409 = vld [vmem:[%s311 + $0x48] sm:$0xff]
        %v410 = vld [vmem:[%s311 + $0x50] sm:$0xff]
        %v411 = vld [vmem:[%s311 + $0x58] sm:$0xff]
        %v412 = vld [vmem:[%s311 + $0x60] sm:$0xff]
        %v413 = vld [vmem:[%s311 + $0x68] sm:$0xff]
        %v414 = vld [vmem:[%s311 + $0x70] sm:$0xff]
        %v415 = vld [vmem:[%s311 + $0x78] sm:$0xff]
        %v416 = vld [vmem:[%s373] sm:$0x3]
        %v418 = vlaneseq
        %v419 = vshrl.u32 %v418, 7
        %v420 = vsub.s32 0, %v419
        %v421 = vrot.slane %v416, %v420
        %v422 = vlaneseq
        %v423 = vshrl.u32 %v422, 7
        %v424 = vsub.s32 1, %v423
        %v425 = vrot.slane %v416, %v424
        %v444 = vunpack.c.l.b16 %v384
        %v445 = vunpack.c.l.b16 %v385
        %v446 = vunpack.c.l.b16 %v386
        %v447 = vunpack.c.l.b16 %v387
        %v448 = vunpack.c.l.b16 %v388
        %v449 = vunpack.c.l.b16 %v389
        %v450 = vunpack.c.l.b16 %v390
        %v451 = vunpack.c.l.b16 %v391
        %v452 = vunpack.c.l.b16 %v392
        %v453 = vunpack.c.l.b16 %v393
        %v454 = vunpack.c.l.b16 %v394
        %v455 = vunpack.c.l.b16 %v395
        %v456 = vunpack.c.l.b16 %v396
        %v457 = vunpack.c.l.b16 %v397
        %v458 = vunpack.c.l.b16 %v398
        %v459 = vunpack.c.l.b16 %v399
        %v460 = vpack.c.b16 %v445, %v444
        %v461 = vpack.c.b16 %v447, %v446
        %v462 = vpack.c.b16 %v449, %v448
        %v463 = vpack.c.b16 %v451, %v450
        %v464 = vpack.c.b16 %v453, %v452
        %v465 = vpack.c.b16 %v455, %v454
        %v466 = vpack.c.b16 %v457, %v456
        %v467 = vpack.c.b16 %v459, %v458
        %v492 = vunpack.c.l.b16 %v400
        %v493 = vunpack.c.h.b16 %v400
        %v494 = vunpack.c.l.b16 %v401
        %v495 = vunpack.c.h.b16 %v401
        %v496 = vunpack.c.l.b16 %v402
        %v497 = vunpack.c.h.b16 %v402
        %v498 = vunpack.c.l.b16 %v403
        %v499 = vunpack.c.h.b16 %v403
        %v500 = vunpack.c.l.b16 %v404
        %v501 = vunpack.c.h.b16 %v404
        %v502 = vunpack.c.l.b16 %v405
        %v503 = vunpack.c.h.b16 %v405
        %v504 = vunpack.c.l.b16 %v406
        %v505 = vunpack.c.h.b16 %v406
        %v506 = vunpack.c.l.b16 %v407
        %v507 = vunpack.c.h.b16 %v407
        %v508 = vunpack.c.l.b16 %v408
        %v509 = vunpack.c.h.b16 %v408
        %v510 = vunpack.c.l.b16 %v409
        %v511 = vunpack.c.h.b16 %v409
        %v512 = vunpack.c.l.b16 %v410
        %v513 = vunpack.c.h.b16 %v410
        %v514 = vunpack.c.l.b16 %v411
        %v515 = vunpack.c.h.b16 %v411
        %v516 = vunpack.c.l.b16 %v412
        %v517 = vunpack.c.h.b16 %v412
        %v518 = vunpack.c.l.b16 %v413
        %v519 = vunpack.c.h.b16 %v413
        %v520 = vunpack.c.l.b16 %v414
        %v521 = vunpack.c.h.b16 %v414
        %v522 = vunpack.c.l.b16 %v415
        %v523 = vunpack.c.h.b16 %v415
        %v524 = vpack.c.b16 %v494, %v492
        %v525 = vpack.c.b16 %v495, %v493
        %v526 = vpack.c.b16 %v498, %v496
        %v527 = vpack.c.b16 %v499, %v497
        %v528 = vpack.c.b16 %v502, %v500
        %v529 = vpack.c.b16 %v503, %v501
        %v530 = vpack.c.b16 %v506, %v504
        %v531 = vpack.c.b16 %v507, %v505
        %v532 = vpack.c.b16 %v510, %v508
        %v533 = vpack.c.b16 %v511, %v509
        %v534 = vpack.c.b16 %v514, %v512
        %v535 = vpack.c.b16 %v515, %v513
        %v536 = vpack.c.b16 %v518, %v516
        %v537 = vpack.c.b16 %v519, %v517
        %v538 = vpack.c.b16 %v522, %v520
        %v539 = vpack.c.b16 %v523, %v521
        %556 = vmatprep.subr.bf16.mxu0 %v539
        %557 = vmatpush1.bf16.msra.mxu0 %v538
        %558 = vmatprep.subr.bf16.mxu0 %v537
        %559 = vmatpush1.bf16.msra.mxu0 %v536
        %560 = vmatprep.subr.bf16.mxu0 %v535
        %561 = vmatpush1.bf16.msra.mxu0 %v534
        %562 = vmatprep.subr.bf16.mxu0 %v533
        %563 = vmatpush1.bf16.msra.mxu0 %v532
        %564 = vmatprep.subr.bf16.mxu0 %v531
        %565 = vmatpush1.bf16.msra.mxu0 %v530
        %566 = vmatprep.subr.bf16.mxu0 %v529
        %567 = vmatpush1.bf16.msra.mxu0 %v528
        %568 = vmatprep.subr.bf16.mxu0 %v527
        %569 = vmatpush1.bf16.msra.mxu0 %v526
        %570 = vmatprep.subr.bf16.mxu0 %v525
        %571 = vmatpush1.bf16.msra.mxu0 %v524
        %572 = vmatprep.subr.bf16.mxu0 0
        %573 = vmatpush2.bf16.msra.mxu0 0
        %574 = vmatprep.subr.bf16.mxu0 0
        %575 = vmatpush2.bf16.msra.mxu0 0
        %576 = vmatprep.subr.bf16.mxu0 0
        %577 = vmatpush2.bf16.msra.mxu0 0
        %578 = vmatprep.subr.bf16.mxu0 0
        %579 = vmatpush2.bf16.msra.mxu0 0
        %580 = vmatprep.subr.bf16.mxu0 0
        %581 = vmatpush2.bf16.msra.mxu0 0
        %582 = vmatprep.subr.bf16.mxu0 0
        %583 = vmatpush2.bf16.msra.mxu0 0
        %584 = vmatprep.subr.bf16.mxu0 0
        %585 = vmatpush2.bf16.msra.mxu0 0
        %586 = vmatprep.subr.bf16.mxu0 0
        %587 = vmatpush2.bf16.msra.mxu0 0
        %588 = vmatprep.mubr.bf16.mxu0 0
        %589 = vmatmul.mubr.bf16.gmra.mxu0 %v460
        %v590 = vpop.f32.mrf.mxu0
        %v591 = vadd.f32 %v421, %v590
        %v592 = vpop.f32.mrf.mxu0
        %v593 = vadd.f32 %v425, %v592
        %v594 = vpop.f32.mrf.mxu0
        %v595 = vadd.f32 %v421, %v594
        %v596 = vpop.f32.mrf.mxu0
        %v597 = vadd.f32 %v425, %v596
        %598 = vmatprep.mubr.bf16.mxu0 0
        %599 = vmatmul.mubr.bf16.gmra.mxu0 %v461
        %v600 = vpop.f32.mrf.mxu0
        %v601 = vadd.f32 %v421, %v600
        %v602 = vpop.f32.mrf.mxu0
        %v603 = vadd.f32 %v425, %v602
        %v604 = vpop.f32.mrf.mxu0
        %v605 = vadd.f32 %v421, %v604
        %v606 = vpop.f32.mrf.mxu0
        %v607 = vadd.f32 %v425, %v606
        %608 = vmatprep.mubr.bf16.mxu0 0
        %609 = vmatmul.mubr.bf16.gmra.mxu0 %v462
        %v610 = vpop.f32.mrf.mxu0
        %v611 = vadd.f32 %v421, %v610
        %v612 = vpop.f32.mrf.mxu0
        %v613 = vadd.f32 %v425, %v612
        %v614 = vpop.f32.mrf.mxu0
        %v615 = vadd.f32 %v421, %v614
        %v616 = vpop.f32.mrf.mxu0
        %v617 = vadd.f32 %v425, %v616
        %618 = vmatprep.mubr.bf16.mxu0 0
        %619 = vmatmul.mubr.bf16.gmra.mxu0 %v463
        %v620 = vpop.f32.mrf.mxu0
        %v621 = vadd.f32 %v421, %v620
        %v622 = vpop.f32.mrf.mxu0
        %v623 = vadd.f32 %v425, %v622
        %v624 = vpop.f32.mrf.mxu0
        %v625 = vadd.f32 %v421, %v624
        %v626 = vpop.f32.mrf.mxu0
        %v627 = vadd.f32 %v425, %v626
        %628 = vmatprep.mubr.bf16.mxu0 0
        %629 = vmatmul.mubr.bf16.gmra.mxu0 %v464
        %v630 = vpop.f32.mrf.mxu0
        %v631 = vadd.f32 %v421, %v630
        %v632 = vpop.f32.mrf.mxu0
        %v633 = vadd.f32 %v425, %v632
        %v634 = vpop.f32.mrf.mxu0
        %v635 = vadd.f32 %v421, %v634
        %v636 = vpop.f32.mrf.mxu0
        %v637 = vadd.f32 %v425, %v636
        %638 = vmatprep.mubr.bf16.mxu0 0
        %639 = vmatmul.mubr.bf16.gmra.mxu0 %v465
        %v640 = vpop.f32.mrf.mxu0
        %v641 = vadd.f32 %v421, %v640
        %v642 = vpop.f32.mrf.mxu0
        %v643 = vadd.f32 %v425, %v642
        %v644 = vpop.f32.mrf.mxu0
        %v645 = vadd.f32 %v421, %v644
        %v646 = vpop.f32.mrf.mxu0
        %v647 = vadd.f32 %v425, %v646
        %648 = vmatprep.mubr.bf16.mxu0 0
        %649 = vmatmul.mubr.bf16.gmra.mxu0 %v466
        %v650 = vpop.f32.mrf.mxu0
        %v651 = vadd.f32 %v421, %v650
        %v652 = vpop.f32.mrf.mxu0
        %v653 = vadd.f32 %v425, %v652
        %v654 = vpop.f32.mrf.mxu0
        %v655 = vadd.f32 %v421, %v654
        %v656 = vpop.f32.mrf.mxu0
        %v657 = vadd.f32 %v425, %v656
        %658 = vmatprep.mubr.bf16.mxu0 0
        %659 = vmatmul.mubr.bf16.gmra.mxu0 %v467
        %v660 = vpop.f32.mrf.mxu0
        %v661 = vadd.f32 %v421, %v660
        %v662 = vpop.f32.mrf.mxu0
        %v663 = vadd.f32 %v425, %v662
        %v664 = vpop.f32.mrf.mxu0
        %v665 = vadd.f32 %v421, %v664
        %v666 = vpop.f32.mrf.mxu0
        %v667 = vadd.f32 %v425, %v666
        %668 = vdwg.mxu0
        %v669 = vmax.f32 %v591, 0.0
        %v670 = vmax.f32 %v593, 0.0
        %v671 = vmax.f32 %v595, 0.0
        %v672 = vmax.f32 %v597, 0.0
        %v673 = vmax.f32 %v601, 0.0
        %v674 = vmax.f32 %v603, 0.0
        %v675 = vmax.f32 %v605, 0.0
        %v676 = vmax.f32 %v607, 0.0
        %v677 = vmax.f32 %v611, 0.0
        %v678 = vmax.f32 %v613, 0.0
        %v679 = vmax.f32 %v615, 0.0
        %v680 = vmax.f32 %v617, 0.0
        %v681 = vmax.f32 %v621, 0.0
        %v682 = vmax.f32 %v623, 0.0
        %v683 = vmax.f32 %v625, 0.0
        %v684 = vmax.f32 %v627, 0.0
        %v685 = vmax.f32 %v631, 0.0
        %v686 = vmax.f32 %v633, 0.0
        %v687 = vmax.f32 %v635, 0.0
        %v688 = vmax.f32 %v637, 0.0
        %v689 = vmax.f32 %v641, 0.0
        %v690 = vmax.f32 %v643, 0.0
        %v691 = vmax.f32 %v645, 0.0
        %v692 = vmax.f32 %v647, 0.0
        %v693 = vmax.f32 %v651, 0.0
        %v694 = vmax.f32 %v653, 0.0
        %v695 = vmax.f32 %v655, 0.0
        %v696 = vmax.f32 %v657, 0.0
        %v697 = vmax.f32 %v661, 0.0
        %v698 = vmax.f32 %v663, 0.0
        %v699 = vmax.f32 %v665, 0.0
        %v700 = vmax.f32 %v667, 0.0
        %v701 = vpack.c.bf16 %v671, %v669
        %v702 = vpack.c.bf16 %v672, %v670
        %v703 = vpack.c.bf16 %v675, %v673
        %v704 = vpack.c.bf16 %v676, %v674
        %v705 = vpack.c.bf16 %v679, %v677
        %v706 = vpack.c.bf16 %v680, %v678
        %v707 = vpack.c.bf16 %v683, %v681
        %v708 = vpack.c.bf16 %v684, %v682
        %v709 = vpack.c.bf16 %v687, %v685
        %v710 = vpack.c.bf16 %v688, %v686
        %v711 = vpack.c.bf16 %v691, %v689
        %v712 = vpack.c.bf16 %v692, %v690
        %v713 = vpack.c.bf16 %v695, %v693
        %v714 = vpack.c.bf16 %v696, %v694
        %v715 = vpack.c.bf16 %v699, %v697
        %v716 = vpack.c.bf16 %v700, %v698
        %v717 = vld [vmem:[%s320] sm:$0xff]
        %v718 = vld [vmem:[%s320 + $0x8] sm:$0xff]
        %v719 = vld [vmem:[%s320 + $0x10] sm:$0xff]
        %v720 = vld [vmem:[%s320 + $0x18] sm:$0xff]
        %v721 = vld [vmem:[%s320 + $0x20] sm:$0xff]
        %v722 = vld [vmem:[%s320 + $0x28] sm:$0xff]
        %v723 = vld [vmem:[%s320 + $0x30] sm:$0xff]
        %v724 = vld [vmem:[%s320 + $0x38] sm:$0xff]
        %v725 = vld [vmem:[%s320 + $0x40] sm:$0xff]
        %v726 = vld [vmem:[%s320 + $0x48] sm:$0xff]
        %v727 = vld [vmem:[%s320 + $0x50] sm:$0xff]
        %v728 = vld [vmem:[%s320 + $0x58] sm:$0xff]
        %v729 = vld [vmem:[%s320 + $0x60] sm:$0xff]
        %v730 = vld [vmem:[%s320 + $0x68] sm:$0xff]
        %v731 = vld [vmem:[%s320 + $0x70] sm:$0xff]
        %v732 = vld [vmem:[%s320 + $0x78] sm:$0xff]
        %v733 = vld [vmem:[%s320 + $0x80] sm:$0xff]
        %v734 = vld [vmem:[%s320 + $0x88] sm:$0xff]
        %v735 = vld [vmem:[%s320 + $0x90] sm:$0xff]
        %v736 = vld [vmem:[%s320 + $0x98] sm:$0xff]
        %v737 = vld [vmem:[%s320 + $0xa0] sm:$0xff]
        %v738 = vld [vmem:[%s320 + $0xa8] sm:$0xff]
        %v739 = vld [vmem:[%s320 + $0xb0] sm:$0xff]
        %v740 = vld [vmem:[%s320 + $0xb8] sm:$0xff]
        %v741 = vld [vmem:[%s320 + $0xc0] sm:$0xff]
        %v742 = vld [vmem:[%s320 + $0xc8] sm:$0xff]
        %v743 = vld [vmem:[%s320 + $0xd0] sm:$0xff]
        %v744 = vld [vmem:[%s320 + $0xd8] sm:$0xff]
        %v745 = vld [vmem:[%s320 + $0xe0] sm:$0xff]
        %v746 = vld [vmem:[%s320 + $0xe8] sm:$0xff]
        %v747 = vld [vmem:[%s320 + $0xf0] sm:$0xff]
        %v748 = vld [vmem:[%s320 + $0xf8] sm:$0xff]
        %v749 = vld [vmem:[%s380] sm:$0x3]
        %v751 = vlaneseq
        %v752 = vshrl.u32 %v751, 7
        %v753 = vsub.s32 0, %v752
        %v754 = vrot.slane %v749, %v753
        %v755 = vlaneseq
        %v756 = vshrl.u32 %v755, 7
        %v757 = vsub.s32 1, %v756
        %v758 = vrot.slane %v749, %v757
        %v793 = vunpack.c.l.b16 %v717
        %v794 = vunpack.c.h.b16 %v717
        %v795 = vunpack.c.l.b16 %v718
        %v796 = vunpack.c.h.b16 %v718
        %v797 = vunpack.c.l.b16 %v719
        %v798 = vunpack.c.h.b16 %v719
        %v799 = vunpack.c.l.b16 %v720
        %v800 = vunpack.c.h.b16 %v720
        %v801 = vunpack.c.l.b16 %v721
        %v802 = vunpack.c.h.b16 %v721
        %v803 = vunpack.c.l.b16 %v722
        %v804 = vunpack.c.h.b16 %v722
        %v805 = vunpack.c.l.b16 %v723
        %v806 = vunpack.c.h.b16 %v723
        %v807 = vunpack.c.l.b16 %v724
        %v808 = vunpack.c.h.b16 %v724
        %v809 = vunpack.c.l.b16 %v725
        %v810 = vunpack.c.h.b16 %v725
        %v811 = vunpack.c.l.b16 %v726
        %v812 = vunpack.c.h.b16 %v726
        %v813 = vunpack.c.l.b16 %v727
        %v814 = vunpack.c.h.b16 %v727
        %v815 = vunpack.c.l.b16 %v728
        %v816 = vunpack.c.h.b16 %v728
        %v817 = vunpack.c.l.b16 %v729
        %v818 = vunpack.c.h.b16 %v729
        %v819 = vunpack.c.l.b16 %v730
        %v820 = vunpack.c.h.b16 %v730
        %v821 = vunpack.c.l.b16 %v731
        %v822 = vunpack.c.h.b16 %v731
        %v823 = vunpack.c.l.b16 %v732
        %v824 = vunpack.c.h.b16 %v732
        %v825 = vunpack.c.l.b16 %v733
        %v826 = vunpack.c.h.b16 %v733
        %v827 = vunpack.c.l.b16 %v734
        %v828 = vunpack.c.h.b16 %v734
        %v829 = vunpack.c.l.b16 %v735
        %v830 = vunpack.c.h.b16 %v735
        %v831 = vunpack.c.l.b16 %v736
        %v832 = vunpack.c.h.b16 %v736
        %v833 = vunpack.c.l.b16 %v737
        %v834 = vunpack.c.h.b16 %v737
        %v835 = vunpack.c.l.b16 %v738
        %v836 = vunpack.c.h.b16 %v738
        %v837 = vunpack.c.l.b16 %v739
        %v838 = vunpack.c.h.b16 %v739
        %v839 = vunpack.c.l.b16 %v740
        %v840 = vunpack.c.h.b16 %v740
        %v841 = vunpack.c.l.b16 %v741
        %v842 = vunpack.c.h.b16 %v741
        %v843 = vunpack.c.l.b16 %v742
        %v844 = vunpack.c.h.b16 %v742
        %v845 = vunpack.c.l.b16 %v743
        %v846 = vunpack.c.h.b16 %v743
        %v847 = vunpack.c.l.b16 %v744
        %v848 = vunpack.c.h.b16 %v744
        %v849 = vunpack.c.l.b16 %v745
        %v850 = vunpack.c.h.b16 %v745
        %v851 = vunpack.c.l.b16 %v746
        %v852 = vunpack.c.h.b16 %v746
        %v853 = vunpack.c.l.b16 %v747
        %v854 = vunpack.c.h.b16 %v747
        %v855 = vunpack.c.l.b16 %v748
        %v856 = vunpack.c.h.b16 %v748
        %v857 = vpack.c.b16 %v795, %v793
        %v858 = vpack.c.b16 %v796, %v794
        %v859 = vpack.c.b16 %v799, %v797
        %v860 = vpack.c.b16 %v800, %v798
        %v861 = vpack.c.b16 %v803, %v801
        %v862 = vpack.c.b16 %v804, %v802
        %v863 = vpack.c.b16 %v807, %v805
        %v864 = vpack.c.b16 %v808, %v806
        %v865 = vpack.c.b16 %v811, %v809
        %v866 = vpack.c.b16 %v812, %v810
        %v867 = vpack.c.b16 %v815, %v813
        %v868 = vpack.c.b16 %v816, %v814
        %v869 = vpack.c.b16 %v819, %v817
        %v870 = vpack.c.b16 %v820, %v818
        %v871 = vpack.c.b16 %v823, %v821
        %v872 = vpack.c.b16 %v824, %v822
        %v873 = vpack.c.b16 %v827, %v825
        %v874 = vpack.c.b16 %v828, %v826
        %v875 = vpack.c.b16 %v831, %v829
        %v876 = vpack.c.b16 %v832, %v830
        %v877 = vpack.c.b16 %v835, %v833
        %v878 = vpack.c.b16 %v836, %v834
        %v879 = vpack.c.b16 %v839, %v837
        %v880 = vpack.c.b16 %v840, %v838
        %v881 = vpack.c.b16 %v843, %v841
        %v882 = vpack.c.b16 %v844, %v842
        %v883 = vpack.c.b16 %v847, %v845
        %v884 = vpack.c.b16 %v848, %v846
        %v885 = vpack.c.b16 %v851, %v849
        %v886 = vpack.c.b16 %v852, %v850
        %v887 = vpack.c.b16 %v855, %v853
        %v888 = vpack.c.b16 %v856, %v854
        %921 = vmatprep.subr.bf16.mxu0 %v872
        %922 = vmatpush1.bf16.msra.mxu0 %v871
        %923 = vmatprep.subr.bf16.mxu0 %v870
        %924 = vmatpush1.bf16.msra.mxu0 %v869
        %925 = vmatprep.subr.bf16.mxu0 %v868
        %926 = vmatpush1.bf16.msra.mxu0 %v867
        %927 = vmatprep.subr.bf16.mxu0 %v866
        %928 = vmatpush1.bf16.msra.mxu0 %v865
        %929 = vmatprep.subr.bf16.mxu0 %v864
        %930 = vmatpush1.bf16.msra.mxu0 %v863
        %931 = vmatprep.subr.bf16.mxu0 %v862
        %932 = vmatpush1.bf16.msra.mxu0 %v861
        %933 = vmatprep.subr.bf16.mxu0 %v860
        %934 = vmatpush1.bf16.msra.mxu0 %v859
        %935 = vmatprep.subr.bf16.mxu0 %v858
        %936 = vmatpush1.bf16.msra.mxu0 %v857
        %937 = vmatprep.subr.bf16.mxu0 %v888
        %938 = vmatpush2.bf16.msra.mxu0 %v887
        %939 = vmatprep.subr.bf16.mxu0 %v886
        %940 = vmatpush2.bf16.msra.mxu0 %v885
        %941 = vmatprep.subr.bf16.mxu0 %v884
        %942 = vmatpush2.bf16.msra.mxu0 %v883
        %943 = vmatprep.subr.bf16.mxu0 %v882
        %944 = vmatpush2.bf16.msra.mxu0 %v881
        %945 = vmatprep.subr.bf16.mxu0 %v880
        %946 = vmatpush2.bf16.msra.mxu0 %v879
        %947 = vmatprep.subr.bf16.mxu0 %v878
        %948 = vmatpush2.bf16.msra.mxu0 %v877
        %949 = vmatprep.subr.bf16.mxu0 %v876
        %950 = vmatpush2.bf16.msra.mxu0 %v875
        %951 = vmatprep.subr.bf16.mxu0 %v874
        %952 = vmatpush2.bf16.msra.mxu0 %v873
        %953 = vmatprep.mubr.bf16.mxu0 %v702
        %954 = vmatmul.mubr.bf16.gmra.mxu0 %v701
        %v955 = vpop.f32.mrf.mxu0
        %v956 = vadd.f32 %v754, %v955
        %v957 = vpop.f32.mrf.mxu0
        %v958 = vadd.f32 %v758, %v957
        %v959 = vpop.f32.mrf.mxu0
        %v960 = vadd.f32 %v754, %v959
        %v961 = vpop.f32.mrf.mxu0
        %v962 = vadd.f32 %v758, %v961
        %963 = vmatprep.mubr.bf16.mxu0 %v704
        %964 = vmatmul.mubr.bf16.gmra.mxu0 %v703
        %v965 = vpop.f32.mrf.mxu0
        %v966 = vadd.f32 %v754, %v965
        %v967 = vpop.f32.mrf.mxu0
        %v968 = vadd.f32 %v758, %v967
        %v969 = vpop.f32.mrf.mxu0
        %v970 = vadd.f32 %v754, %v969
        %v971 = vpop.f32.mrf.mxu0
        %v972 = vadd.f32 %v758, %v971
        %973 = vmatprep.mubr.bf16.mxu0 %v706
        %974 = vmatmul.mubr.bf16.gmra.mxu0 %v705
        %v975 = vpop.f32.mrf.mxu0
        %v976 = vadd.f32 %v754, %v975
        %v977 = vpop.f32.mrf.mxu0
        %v978 = vadd.f32 %v758, %v977
        %v979 = vpop.f32.mrf.mxu0
        %v980 = vadd.f32 %v754, %v979
        %v981 = vpop.f32.mrf.mxu0
        %v982 = vadd.f32 %v758, %v981
        %983 = vmatprep.mubr.bf16.mxu0 %v708
        %984 = vmatmul.mubr.bf16.gmra.mxu0 %v707
        %v985 = vpop.f32.mrf.mxu0
        %v986 = vadd.f32 %v754, %v985
        %v987 = vpop.f32.mrf.mxu0
        %v988 = vadd.f32 %v758, %v987
        %v989 = vpop.f32.mrf.mxu0
        %v990 = vadd.f32 %v754, %v989
        %v991 = vpop.f32.mrf.mxu0
        %v992 = vadd.f32 %v758, %v991
        %993 = vmatprep.mubr.bf16.mxu0 %v710
        %994 = vmatmul.mubr.bf16.gmra.mxu0 %v709
        %v995 = vpop.f32.mrf.mxu0
        %v996 = vadd.f32 %v754, %v995
        %v997 = vpop.f32.mrf.mxu0
        %v998 = vadd.f32 %v758, %v997
        %v999 = vpop.f32.mrf.mxu0
        %v1000 = vadd.f32 %v754, %v999
        %v1001 = vpop.f32.mrf.mxu0
        %v1002 = vadd.f32 %v758, %v1001
        %1003 = vmatprep.mubr.bf16.mxu0 %v712
        %1004 = vmatmul.mubr.bf16.gmra.mxu0 %v711
        %v1005 = vpop.f32.mrf.mxu0
        %v1006 = vadd.f32 %v754, %v1005
        %v1007 = vpop.f32.mrf.mxu0
        %v1008 = vadd.f32 %v758, %v1007
        %v1009 = vpop.f32.mrf.mxu0
        %v1010 = vadd.f32 %v754, %v1009
        %v1011 = vpop.f32.mrf.mxu0
        %v1012 = vadd.f32 %v758, %v1011
        %1013 = vmatprep.mubr.bf16.mxu0 %v714
        %1014 = vmatmul.mubr.bf16.gmra.mxu0 %v713
        %v1015 = vpop.f32.mrf.mxu0
        %v1016 = vadd.f32 %v754, %v1015
        %v1017 = vpop.f32.mrf.mxu0
        %v1018 = vadd.f32 %v758, %v1017
        %v1019 = vpop.f32.mrf.mxu0
        %v1020 = vadd.f32 %v754, %v1019
        %v1021 = vpop.f32.mrf.mxu0
        %v1022 = vadd.f32 %v758, %v1021
        %1023 = vmatprep.mubr.bf16.mxu0 %v716
        %1024 = vmatmul.mubr.bf16.gmra.mxu0 %v715
        %v1025 = vpop.f32.mrf.mxu0
        %v1026 = vadd.f32 %v754, %v1025
        %v1027 = vpop.f32.mrf.mxu0
        %v1028 = vadd.f32 %v758, %v1027
        %v1029 = vpop.f32.mrf.mxu0
        %v1030 = vadd.f32 %v754, %v1029
        %v1031 = vpop.f32.mrf.mxu0
        %v1032 = vadd.f32 %v758, %v1031
        %1033 = vdwg.mxu0
        %v1034 = vmul.f32 %v956, %v956
        %v1035 = vmul.f32 %v958, %v958
        %v1036 = vmul.f32 %v960, %v960
        %v1037 = vmul.f32 %v962, %v962
        %v1038 = vmul.f32 %v966, %v966
        %v1039 = vmul.f32 %v968, %v968
        %v1040 = vmul.f32 %v970, %v970
        %v1041 = vmul.f32 %v972, %v972
        %v1042 = vmul.f32 %v976, %v976
        %v1043 = vmul.f32 %v978, %v978
        %v1044 = vmul.f32 %v980, %v980
        %v1045 = vmul.f32 %v982, %v982
        %v1046 = vmul.f32 %v986, %v986
        %v1047 = vmul.f32 %v988, %v988
        %v1048 = vmul.f32 %v990, %v990
        %v1049 = vmul.f32 %v992, %v992
        %v1050 = vmul.f32 %v996, %v996
        %v1051 = vmul.f32 %v998, %v998
        %v1052 = vmul.f32 %v1000, %v1000
        %v1053 = vmul.f32 %v1002, %v1002
        %v1054 = vmul.f32 %v1006, %v1006
        %v1055 = vmul.f32 %v1008, %v1008
        %v1056 = vmul.f32 %v1010, %v1010
        %v1057 = vmul.f32 %v1012, %v1012
        %v1058 = vmul.f32 %v1016, %v1016
        %v1059 = vmul.f32 %v1018, %v1018
        %v1060 = vmul.f32 %v1020, %v1020
        %v1061 = vmul.f32 %v1022, %v1022
        %v1062 = vmul.f32 %v1026, %v1026
        %v1063 = vmul.f32 %v1028, %v1028
        %v1064 = vmul.f32 %v1030, %v1030
        %v1065 = vmul.f32 %v1032, %v1032
        %v1066 = vadd.f32 %v1034, %v1035
        %1067 = vadd.xlane.f32.xlu0 %v1066
        %v1068 = vpop.xlane.xlu0 %1067
        %v1069 = vadd.f32 %v1036, %v1037
        %1070 = vadd.xlane.f32.xlu0 %v1069
        %v1071 = vpop.xlane.xlu0 %1070
        %v1072 = vadd.f32 %v1038, %v1039
        %1073 = vadd.xlane.f32.xlu0 %v1072
        %v1074 = vpop.xlane.xlu0 %1073
        %v1075 = vadd.f32 %v1040, %v1041
        %1076 = vadd.xlane.f32.xlu0 %v1075
        %v1077 = vpop.xlane.xlu0 %1076
        %v1078 = vadd.f32 %v1042, %v1043
        %1079 = vadd.xlane.f32.xlu0 %v1078
        %v1080 = vpop.xlane.xlu0 %1079
        %v1081 = vadd.f32 %v1044, %v1045
        %1082 = vadd.xlane.f32.xlu0 %v1081
        %v1083 = vpop.xlane.xlu0 %1082
        %v1084 = vadd.f32 %v1046, %v1047
        %1085 = vadd.xlane.f32.xlu0 %v1084
        %v1086 = vpop.xlane.xlu0 %1085
        %v1087 = vadd.f32 %v1048, %v1049
        %1088 = vadd.xlane.f32.xlu0 %v1087
        %v1089 = vpop.xlane.xlu0 %1088
        %v1090 = vadd.f32 %v1050, %v1051
        %1091 = vadd.xlane.f32.xlu0 %v1090
        %v1092 = vpop.xlane.xlu0 %1091
        %v1093 = vadd.f32 %v1052, %v1053
        %1094 = vadd.xlane.f32.xlu0 %v1093
        %v1095 = vpop.xlane.xlu0 %1094
        %v1096 = vadd.f32 %v1054, %v1055
        %1097 = vadd.xlane.f32.xlu0 %v1096
        %v1098 = vpop.xlane.xlu0 %1097
        %v1099 = vadd.f32 %v1056, %v1057
        %1100 = vadd.xlane.f32.xlu0 %v1099
        %v1101 = vpop.xlane.xlu0 %1100
        %v1102 = vadd.f32 %v1058, %v1059
        %1103 = vadd.xlane.f32.xlu0 %v1102
        %v1104 = vpop.xlane.xlu0 %1103
        %v1105 = vadd.f32 %v1060, %v1061
        %1106 = vadd.xlane.f32.xlu0 %v1105
        %v1107 = vpop.xlane.xlu0 %1106
        %v1108 = vadd.f32 %v1062, %v1063
        %1109 = vadd.xlane.f32.xlu0 %v1108
        %v1110 = vpop.xlane.xlu0 %1109
        %v1111 = vadd.f32 %v1064, %v1065
        %1112 = vadd.xlane.f32.xlu0 %v1111
        %v1113 = vpop.xlane.xlu0 %1112
        %v1114 = vrsqrt.pop %v1068
        %v1115 = vmul.f32 %v1068, %v1114
        %vm1116 = vcmp.eq.f32.partialorder %v1068, inf
        %v1117 = vsel %vm1116, %v1068, %v1115
        %vm1118 = vcmp.eq.f32.partialorder %v1068, 0.0
        %v1119 = vand.u32 %v1068, 2147483648
        %v1120 = vsel %vm1118, %v1119, %v1117
        %v1121 = vrsqrt.pop %v1071
        %v1122 = vmul.f32 %v1071, %v1121
        %vm1123 = vcmp.eq.f32.partialorder %v1071, inf
        %v1124 = vsel %vm1123, %v1071, %v1122
        %vm1125 = vcmp.eq.f32.partialorder %v1071, 0.0
        %v1126 = vand.u32 %v1071, 2147483648
        %v1127 = vsel %vm1125, %v1126, %v1124
        %v1128 = vrsqrt.pop %v1074
        %v1129 = vmul.f32 %v1074, %v1128
        %vm1130 = vcmp.eq.f32.partialorder %v1074, inf
        %v1131 = vsel %vm1130, %v1074, %v1129
        %vm1132 = vcmp.eq.f32.partialorder %v1074, 0.0
        %v1133 = vand.u32 %v1074, 2147483648
        %v1134 = vsel %vm1132, %v1133, %v1131
        %v1135 = vrsqrt.pop %v1077
        %v1136 = vmul.f32 %v1077, %v1135
        %vm1137 = vcmp.eq.f32.partialorder %v1077, inf
        %v1138 = vsel %vm1137, %v1077, %v1136
        %vm1139 = vcmp.eq.f32.partialorder %v1077, 0.0
        %v1140 = vand.u32 %v1077, 2147483648
        %v1141 = vsel %vm1139, %v1140, %v1138
        %v1142 = vrsqrt.pop %v1080
        %v1143 = vmul.f32 %v1080, %v1142
        %vm1144 = vcmp.eq.f32.partialorder %v1080, inf
        %v1145 = vsel %vm1144, %v1080, %v1143
        %vm1146 = vcmp.eq.f32.partialorder %v1080, 0.0
        %v1147 = vand.u32 %v1080, 2147483648
        %v1148 = vsel %vm1146, %v1147, %v1145
        %v1149 = vrsqrt.pop %v1083
        %v1150 = vmul.f32 %v1083, %v1149
        %vm1151 = vcmp.eq.f32.partialorder %v1083, inf
        %v1152 = vsel %vm1151, %v1083, %v1150
        %vm1153 = vcmp.eq.f32.partialorder %v1083, 0.0
        %v1154 = vand.u32 %v1083, 2147483648
        %v1155 = vsel %vm1153, %v1154, %v1152
        %v1156 = vrsqrt.pop %v1086
        %v1157 = vmul.f32 %v1086, %v1156
        %vm1158 = vcmp.eq.f32.partialorder %v1086, inf
        %v1159 = vsel %vm1158, %v1086, %v1157
        %vm1160 = vcmp.eq.f32.partialorder %v1086, 0.0
        %v1161 = vand.u32 %v1086, 2147483648
        %v1162 = vsel %vm1160, %v1161, %v1159
        %v1163 = vrsqrt.pop %v1089
        %v1164 = vmul.f32 %v1089, %v1163
        %vm1165 = vcmp.eq.f32.partialorder %v1089, inf
        %v1166 = vsel %vm1165, %v1089, %v1164
        %vm1167 = vcmp.eq.f32.partialorder %v1089, 0.0
        %v1168 = vand.u32 %v1089, 2147483648
        %v1169 = vsel %vm1167, %v1168, %v1166
        %v1170 = vrsqrt.pop %v1092
        %v1171 = vmul.f32 %v1092, %v1170
        %vm1172 = vcmp.eq.f32.partialorder %v1092, inf
        %v1173 = vsel %vm1172, %v1092, %v1171
        %vm1174 = vcmp.eq.f32.partialorder %v1092, 0.0
        %v1175 = vand.u32 %v1092, 2147483648
        %v1176 = vsel %vm1174, %v1175, %v1173
        %v1177 = vrsqrt.pop %v1095
        %v1178 = vmul.f32 %v1095, %v1177
        %vm1179 = vcmp.eq.f32.partialorder %v1095, inf
        %v1180 = vsel %vm1179, %v1095, %v1178
        %vm1181 = vcmp.eq.f32.partialorder %v1095, 0.0
        %v1182 = vand.u32 %v1095, 2147483648
        %v1183 = vsel %vm1181, %v1182, %v1180
        %v1184 = vrsqrt.pop %v1098
        %v1185 = vmul.f32 %v1098, %v1184
        %vm1186 = vcmp.eq.f32.partialorder %v1098, inf
        %v1187 = vsel %vm1186, %v1098, %v1185
        %vm1188 = vcmp.eq.f32.partialorder %v1098, 0.0
        %v1189 = vand.u32 %v1098, 2147483648
        %v1190 = vsel %vm1188, %v1189, %v1187
        %v1191 = vrsqrt.pop %v1101
        %v1192 = vmul.f32 %v1101, %v1191
        %vm1193 = vcmp.eq.f32.partialorder %v1101, inf
        %v1194 = vsel %vm1193, %v1101, %v1192
        %vm1195 = vcmp.eq.f32.partialorder %v1101, 0.0
        %v1196 = vand.u32 %v1101, 2147483648
        %v1197 = vsel %vm1195, %v1196, %v1194
        %v1198 = vrsqrt.pop %v1104
        %v1199 = vmul.f32 %v1104, %v1198
        %vm1200 = vcmp.eq.f32.partialorder %v1104, inf
        %v1201 = vsel %vm1200, %v1104, %v1199
        %vm1202 = vcmp.eq.f32.partialorder %v1104, 0.0
        %v1203 = vand.u32 %v1104, 2147483648
        %v1204 = vsel %vm1202, %v1203, %v1201
        %v1205 = vrsqrt.pop %v1107
        %v1206 = vmul.f32 %v1107, %v1205
        %vm1207 = vcmp.eq.f32.partialorder %v1107, inf
        %v1208 = vsel %vm1207, %v1107, %v1206
        %vm1209 = vcmp.eq.f32.partialorder %v1107, 0.0
        %v1210 = vand.u32 %v1107, 2147483648
        %v1211 = vsel %vm1209, %v1210, %v1208
        %v1212 = vrsqrt.pop %v1110
        %v1213 = vmul.f32 %v1110, %v1212
        %vm1214 = vcmp.eq.f32.partialorder %v1110, inf
        %v1215 = vsel %vm1214, %v1110, %v1213
        %vm1216 = vcmp.eq.f32.partialorder %v1110, 0.0
        %v1217 = vand.u32 %v1110, 2147483648
        %v1218 = vsel %vm1216, %v1217, %v1215
        %v1219 = vrsqrt.pop %v1113
        %v1220 = vmul.f32 %v1113, %v1219
        %vm1221 = vcmp.eq.f32.partialorder %v1113, inf
        %v1222 = vsel %vm1221, %v1113, %v1220
        %vm1223 = vcmp.eq.f32.partialorder %v1113, 0.0
        %v1224 = vand.u32 %v1113, 2147483648
        %v1225 = vsel %vm1223, %v1224, %v1222
        %v1226 = vadd.f32 %v1120, 1e-07
        %v1227 = vadd.f32 %v1127, 1e-07
        %v1228 = vadd.f32 %v1134, 1e-07
        %v1229 = vadd.f32 %v1141, 1e-07
        %v1230 = vadd.f32 %v1148, 1e-07
        %v1231 = vadd.f32 %v1155, 1e-07
        %v1232 = vadd.f32 %v1162, 1e-07
        %v1233 = vadd.f32 %v1169, 1e-07
        %v1234 = vadd.f32 %v1176, 1e-07
        %v1235 = vadd.f32 %v1183, 1e-07
        %v1236 = vadd.f32 %v1190, 1e-07
        %v1237 = vadd.f32 %v1197, 1e-07
        %v1238 = vadd.f32 %v1204, 1e-07
        %v1239 = vadd.f32 %v1211, 1e-07
        %v1240 = vadd.f32 %v1218, 1e-07
        %v1241 = vadd.f32 %v1225, 1e-07
        %v1242 = vrcp.pop %v1226
        %v1243 = vrcp.pop %v1227
        %v1244 = vrcp.pop %v1228
        %v1245 = vrcp.pop %v1229
        %v1246 = vrcp.pop %v1230
        %v1247 = vrcp.pop %v1231
        %v1248 = vrcp.pop %v1232
        %v1249 = vrcp.pop %v1233
        %v1250 = vrcp.pop %v1234
        %v1251 = vrcp.pop %v1235
        %v1252 = vrcp.pop %v1236
        %v1253 = vrcp.pop %v1237
        %v1254 = vrcp.pop %v1238
        %v1255 = vrcp.pop %v1239
        %v1256 = vrcp.pop %v1240
        %v1257 = vrcp.pop %v1241
        %v1258 = vmul.f32 %v956, %v1242
        %v1259 = vmul.f32 %v958, %v1242
        %v1260 = vmul.f32 %v960, %v1243
        %v1261 = vmul.f32 %v962, %v1243
        %v1262 = vmul.f32 %v966, %v1244
        %v1263 = vmul.f32 %v968, %v1244
        %v1264 = vmul.f32 %v970, %v1245
        %v1265 = vmul.f32 %v972, %v1245
        %v1266 = vmul.f32 %v976, %v1246
        %v1267 = vmul.f32 %v978, %v1246
        %v1268 = vmul.f32 %v980, %v1247
        %v1269 = vmul.f32 %v982, %v1247
        %v1270 = vmul.f32 %v986, %v1248
        %v1271 = vmul.f32 %v988, %v1248
        %v1272 = vmul.f32 %v990, %v1249
        %v1273 = vmul.f32 %v992, %v1249
        %v1274 = vmul.f32 %v996, %v1250
        %v1275 = vmul.f32 %v998, %v1250
        %v1276 = vmul.f32 %v1000, %v1251
        %v1277 = vmul.f32 %v1002, %v1251
        %v1278 = vmul.f32 %v1006, %v1252
        %v1279 = vmul.f32 %v1008, %v1252
        %v1280 = vmul.f32 %v1010, %v1253
        %v1281 = vmul.f32 %v1012, %v1253
        %v1282 = vmul.f32 %v1016, %v1254
        %v1283 = vmul.f32 %v1018, %v1254
        %v1284 = vmul.f32 %v1020, %v1255
        %v1285 = vmul.f32 %v1022, %v1255
        %v1286 = vmul.f32 %v1026, %v1256
        %v1287 = vmul.f32 %v1028, %v1256
        %v1288 = vmul.f32 %v1030, %v1257
        %v1289 = vmul.f32 %v1032, %v1257
        %1290 = vst [vmem:[%s366] sm:$0xff] %v1258
        %1291 = vst [vmem:[%s366 + $0x8] sm:$0xff] %v1259
        %1292 = vst [vmem:[%s366 + $0x10] sm:$0xff] %v1260
        %1293 = vst [vmem:[%s366 + $0x18] sm:$0xff] %v1261
        %1294 = vst [vmem:[%s366 + $0x20] sm:$0xff] %v1262
        %1295 = vst [vmem:[%s366 + $0x28] sm:$0xff] %v1263
        %1296 = vst [vmem:[%s366 + $0x30] sm:$0xff] %v1264
        %1297 = vst [vmem:[%s366 + $0x38] sm:$0xff] %v1265
        %1298 = vst [vmem:[%s366 + $0x40] sm:$0xff] %v1266
        %1299 = vst [vmem:[%s366 + $0x48] sm:$0xff] %v1267
        %1300 = vst [vmem:[%s366 + $0x50] sm:$0xff] %v1268
        %1301 = vst [vmem:[%s366 + $0x58] sm:$0xff] %v1269
        %1302 = vst [vmem:[%s366 + $0x60] sm:$0xff] %v1270
        %1303 = vst [vmem:[%s366 + $0x68] sm:$0xff] %v1271
        %1304 = vst [vmem:[%s366 + $0x70] sm:$0xff] %v1272
        %1305 = vst [vmem:[%s366 + $0x78] sm:$0xff] %v1273
        %1306 = vst [vmem:[%s366 + $0x80] sm:$0xff] %v1274
        %1307 = vst [vmem:[%s366 + $0x88] sm:$0xff] %v1275
        %1308 = vst [vmem:[%s366 + $0x90] sm:$0xff] %v1276
        %1309 = vst [vmem:[%s366 + $0x98] sm:$0xff] %v1277
        %1310 = vst [vmem:[%s366 + $0xa0] sm:$0xff] %v1278
        %1311 = vst [vmem:[%s366 + $0xa8] sm:$0xff] %v1279
        %1312 = vst [vmem:[%s366 + $0xb0] sm:$0xff] %v1280
        %1313 = vst [vmem:[%s366 + $0xb8] sm:$0xff] %v1281
        %1314 = vst [vmem:[%s366 + $0xc0] sm:$0xff] %v1282
        %1315 = vst [vmem:[%s366 + $0xc8] sm:$0xff] %v1283
        %1316 = vst [vmem:[%s366 + $0xd0] sm:$0xff] %v1284
        %1317 = vst [vmem:[%s366 + $0xd8] sm:$0xff] %v1285
        %1318 = vst [vmem:[%s366 + $0xe0] sm:$0xff] %v1286
        %1319 = vst [vmem:[%s366 + $0xe8] sm:$0xff] %v1287
        %1320 = vst [vmem:[%s366 + $0xf0] sm:$0xff] %v1288
        %1321 = vst [vmem:[%s366 + $0xf8] sm:$0xff] %v1289
        %s1322 = sand.u32 %s176, 1
        %s1323 = scalar_lea.sflag [#allocation6], %s1322
        %s1324 = sand.u32 %s176, 1
        %s1325 = smul.addr %s1324, 256
        %s1326 = scalar_lea.vmem [#allocation10], %s1325
        // Predicated region
        $region53: #{tpu_custom_call.1} parent=39 // pred_check
          %p1327 = pneg %p186
        $region54: #{tpu_custom_call.1} parent=39 // pred_check_branch
          %1329 = sbr.rel (%p1327) target = $region56
        $region55: #{tpu_custom_call.1} parent=39 // pred_region
          %s1330 = smul.u32 16, %s30
          %s1332 = ssub.s32 4096, 4096
          %1333 = vsyncadd %s1323, %s1332
          %s1334 = smul.addr %s1330, 2
          %s1335 = smul.addr %s1334, 128
          %s1336 = scalar_lea.hbm %s6, %s1335
          %s1337 = sshll.u32 %s1326, 4
          %s1338 = int_to_ptr.vmem [resolvable:$true] %s1337
          %1343 = dma.vmem_to_hbm [thread:$0]  %s1338, 4096, %s1336, %s1323, 256, 256, 16
        $region56: #{tpu_custom_call.1} parent=39 // pred_fallthru
          _
      $region40: #{tpu_custom_call.1} parent=5 // pred_fallthru
        _
      %p1344 = scmp.le.s32.totalorder 2, %s25
      // Predicated region
      $region57: #{tpu_custom_call.1} parent=5 // pred_check
        %p1345 = pneg %p1344
      $region58: #{tpu_custom_call.1} parent=5 // pred_check_branch
        %1347 = sbr.rel (%p1345) target = $region60
      $region59: #{tpu_custom_call.1} parent=5 // pred_region
        %s1348 = ssub.s32 %s25, 2
        // Predicated region
        $region61: #{tpu_custom_call.1} parent=59 // pred_check
          %p1349 = pneg %p192
        $region62: #{tpu_custom_call.1} parent=59 // pred_check_branch
          %1351 = sbr.rel (%p1349) target = $region64
        $region63: #{tpu_custom_call.1} parent=59 // pred_region
          %s1352 = sand.u32 %s177, 1
          %s1353 = scalar_lea.sflag [#allocation6], %s1352
          %s1354 = sand.u32 %s177, 1
          %s1355 = smul.addr %s1354, 256
          %s1356 = scalar_lea.vmem [#allocation10], %s1355
          %1357 = dma.done %s1353, 4096
        $region64: #{tpu_custom_call.1} parent=59 // pred_fallthru
          _
      $region60: #{tpu_custom_call.1} parent=5 // pred_fallthru
        _
    $region6: #{tpu_custom_call.1} parent=1 // loop_footer
      %s29 = sadd.s32 1, %s25
    $region7: #{tpu_custom_call.1} parent=1 // loop_footer_branch
      %24 = sbr.rel target = $region3
    $region8: #{tpu_custom_call.1} parent=1 // loop_exit
      _
    %1358 = vsyncpa [#allocation5], 1
    %s1359 = scalar_lea.sflag [#allocation5], 1
    %1360 = vsyncpa %s1359, 1
    %1361 = vsyncpa [#allocation8], 1
    %s1362 = scalar_lea.sflag [#allocation8], 1
    %1363 = vsyncpa %s1362, 1
    %1364 = vsyncpa [#allocation6], 1
    %s1365 = scalar_lea.sflag [#allocation6], 1
    %1366 = vsyncpa %s1365, 1

</llo_original>
